<compile_context>
chip_gen: v7x
topology: tpu7x:2x2x1
jax: 0.10.0
libtpu: 0.0.40
codegen_flags: <defaults>
</compile_context>

<pallas_src>
import numpy as np
import jax
import jax.numpy as jnp
from jax.experimental import pallas as pl
from jax.experimental.pallas import tpu as pltpu


def make_pe_buffer(d_model, max_len=5000, dtype=jnp.float32):
    """Deterministic sin/cos positional-encoding table, identical to __init__."""
    position = jnp.arange(max_len, dtype=jnp.float32)[:, None]            # (L, 1)
    div_term = jnp.exp(
        jnp.arange(0, d_model, 2, dtype=jnp.float32) * (-np.log(10000.0) / d_model)
    )                                                                     # (D/2,)
    pe = jnp.zeros((max_len, d_model), dtype=jnp.float32)
    pe = pe.at[:, 0::2].set(jnp.sin(position * div_term))
    pe = pe.at[:, 1::2].set(jnp.cos(position * div_term))
    return pe[:, None, :].astype(dtype)                                   # (L, 1, D)


def _make_kernel(batch, apply_drop, thresh, inv_keep, lane_fold):
    """Build the per-tile kernel body."""

    def add_pe(x, pe):
        if lane_fold:
            # (tS, D) -> (tS, B*D); lane broadcast rides the otherwise-idle XLU
            # slot (do NOT pre-broadcast pe in HBM: that would add read traffic).
            pe = jnp.tile(pe, (1, batch))
        return x + pe

    if apply_drop:
        def kernel(x_ref, pe_ref, bits_ref, o_ref):
            y = add_pe(x_ref[...], pe_ref[...])
            keep = bits_ref[...] >= jnp.uint32(thresh)
            o_ref[...] = jnp.where(keep, y * inv_keep, 0.0).astype(o_ref.dtype)
    else:
        def kernel(x_ref, pe_ref, o_ref):
            o_ref[...] = add_pe(x_ref[...], pe_ref[...]).astype(o_ref.dtype)

    return kernel


def _choose_block_seq(seq_len, row_bytes, pack, target_bytes=4 << 20, min_steps=2):
    """Sequence-tile length: ~target_bytes of x per tile, packing-aligned,
    and (when possible) >=min_steps grid steps so v7x megacore has work to split."""
    t = max(1, target_bytes // max(row_bytes, 1))
    t = min(t, seq_len)
    if min_steps > 1 and seq_len >= min_steps * pack:
        t = min(t, pl.cdiv(seq_len, min_steps))
    if t < seq_len:
        t = max(pack, (t // pack) * pack)
    return int(t)


def positional_encoding_forward(x, pe, *, p=0.1, training=False, rng_key=None,
                                block_seq=None, donate_x=False):
    """x: (S, B, D); pe: (max_len, 1, D).  Returns dropout(x + pe[:S])."""
    S, B, D = x.shape
    max_len = pe.shape[0]
    assert S <= max_len

    apply_drop = bool(training) and p > 0.0
    if apply_drop:
        assert 0.0 < p < 1.0, "dropout prob must be in [0, 1) for training"
        if rng_key is None:
            rng_key = jax.random.PRNGKey(0)

    x_dtype = x.dtype
    itemsize = jnp.dtype(x_dtype).itemsize
    pe = pe.astype(x_dtype)                     # feed pe in x's dtype (less DMA)

    # Sublane packing of the activation dtype: f32 -> 8, bf16 -> 16, int8 -> 32.
    pack = max(8, 32 // itemsize)

    # Lane-dense layouts:
    #   * B >= 8 and D % 128 == 0: keep 3-D (tS, B, D) tiles (full sublanes,
    #     no pe broadcast work).
    #   * otherwise fold batch into lanes, x viewed as (S, B*D); dense whenever
    #     B*D % 128 == 0 (e.g. MDM's B=2, D=512).
    lane_fold = not (D % 128 == 0 and B >= 8)

    row_elems = B * D
    if block_seq is None:
        tS = _choose_block_seq(S, row_elems * itemsize, pack)
    else:
        tS = int(min(block_seq, S))
    grid = (pl.cdiv(S, tS),)

    # keep an element iff uint32 bits >= p * 2^32 (floor -> keep prob is ~1e-10
    # above 1-p; negligible bias)
    thresh = min(int(p * (2 ** 32)), 2 ** 32 - 1)
    inv_keep = 1.0 / (1.0 - p) if apply_drop else 1.0

    kernel = _make_kernel(B, apply_drop, thresh, inv_keep, lane_fold)

    if lane_fold:
        # TODO(synk): when B*D < 128 (tiny models) the folded stores are still
        # masked (vst.msk); folding sequence rows into lanes too would fix it.
        x_in = x.reshape(S, B * D)              # contiguous reshape -> cheap
        x_spec = pl.BlockSpec((tS, B * D), lambda i: (i, 0))
        pe_spec = pl.BlockSpec((tS, None, D), lambda i: (i, 0, 0))
        out_spec = pl.BlockSpec((tS, B * D), lambda i: (i, 0))
        out_shape = jax.ShapeDtypeStruct((S, B * D), x_dtype)
        bits_shape = (S, B * D)
        bits_spec = pl.BlockSpec((tS, B * D), lambda i: (i, 0))
    else:
        x_in = x
        x_spec = pl.BlockSpec((tS, B, D), lambda i: (i, 0, 0))
        pe_spec = pl.BlockSpec((tS, 1, D), lambda i: (i, 0, 0))
        out_spec = pl.BlockSpec((tS, B, D), lambda i: (i, 0, 0))
        out_shape = jax.ShapeDtypeStruct((S, B, D), x_dtype)
        bits_shape = (S, B, D)
        bits_spec = pl.BlockSpec((tS, B, D), lambda i: (i, 0, 0))

    inputs = [x_in, pe]
    in_specs = [x_spec, pe_spec]
    bits_bytes = 0
    if apply_drop:
        bits = jax.random.bits(rng_key, shape=bits_shape, dtype=jnp.uint32)
        inputs.append(bits)
        in_specs.append(bits_spec)
        bits_bytes = int(np.prod(bits_shape)) * 4

    # VMEM budget: double-buffered x + out (+ bits) + tiny pe tile, with slack.
    x_tile = tS * row_elems * itemsize
    pe_tile = tS * D * itemsize
    bits_tile = tS * row_elems * 4 if apply_drop else 0
    vmem_need = 2 * (2 * x_tile + pe_tile + bits_tile) + (2 << 20)
    vmem_limit = int(min(max(vmem_need, 16 << 20), 64 << 20))   # v7x: 64 MiB/TC

    total = S * B * D
    cost = pl.CostEstimate(
        flops=total * (3 if apply_drop else 1),
        transcendentals=0,
        bytes_accessed=2 * total * itemsize + S * D * itemsize + bits_bytes,
    )

    out = pl.pallas_call(
        kernel,
        out_shape=out_shape,
        grid_spec=pltpu.PrefetchScalarGridSpec(
            num_scalar_prefetch=0,
            grid=grid,
            in_specs=in_specs,
            out_specs=out_spec,
        ),
        compiler_params=pltpu.CompilerParams(
            dimension_semantics=("parallel",),
            vmem_limit_bytes=vmem_limit,
        ),
        cost_estimate=cost,
        input_output_aliases=({0: 0} if donate_x else {}),
    )(*inputs)

    if lane_fold:
        out = out.reshape(S, B, D)
    return out


if __name__ == "__main__":
    key = jax.random.PRNGKey(0)
    k1, k2, k3, k4 = jax.random.split(key, 4)

    # --- case 1: narrow d_model (lane-fold path, B*D < 128 -> accepted) -----
    S1, B1, D1 = 64, 2, 32
    x1 = jax.random.normal(k1, (S1, B1, D1), dtype=jnp.float32)
    pe1 = make_pe_buffer(D1, max_len=5000)
    out1 = positional_encoding_forward(x1, pe1, p=0.1, training=False, block_seq=16)
    out1 = jax.block_until_ready(out1)
    ref1 = x1 + pe1[:S1]
    np.testing.assert_allclose(np.asarray(out1), np.asarray(ref1),
                               rtol=1e-6, atol=1e-6)

    # --- case 2: small batch, D % 128 == 0 (lane-fold, fully lane-dense) ----
    S2, B2, D2 = 16, 2, 128
    x2 = jax.random.normal(k2, (S2, B2, D2), dtype=jnp.float32)
    pe2 = make_pe_buffer(D2, max_len=5000)
    out2 = positional_encoding_forward(x2, pe2, p=0.1, training=False)
    out2 = jax.block_until_ready(out2)
    ref2 = x2 + pe2[:S2]
    np.testing.assert_allclose(np.asarray(out2), np.asarray(ref2),
                               rtol=1e-6, atol=1e-6)

    # --- case 3: large batch, D % 128 == 0 (3-D tiled path, full sublanes) --
    S3, B3, D3 = 16, 8, 128
    x3 = jax.random.normal(k3, (S3, B3, D3), dtype=jnp.float32)
    pe3 = make_pe_buffer(D3, max_len=5000)
    out3 = positional_encoding_forward(x3, pe3, p=0.1, training=False, block_seq=8)
    out3 = jax.block_until_ready(out3)
    ref3 = x3 + pe3[:S3]
    np.testing.assert_allclose(np.asarray(out3), np.asarray(ref3),
                               rtol=1e-6, atol=1e-6)

    # --- case 4: training-mode dropout (host bits; cannot bit-match torch) --
    out4 = positional_encoding_forward(x1, pe1, p=0.1, training=True,
                                       rng_key=k4, block_seq=16)
    out4 = jax.block_until_ready(out4)
    assert out4.shape == (S1, B1, D1)
    drop_frac = float(jnp.mean(out4 == 0.0))
    assert 0.04 <= drop_frac <= 0.18, f"unexpected dropout rate {drop_frac}"
    mask = np.asarray(out4) != 0.0            # kept elements are scaled by 1/keep
    np.testing.assert_allclose(np.asarray(out4)[mask],
                               (np.asarray(ref1) / 0.9)[mask],
                               rtol=1e-5, atol=1e-5)

    # --- case 5: training-mode dropout on the 3-D path ----------------------
    out5 = positional_encoding_forward(x3, pe3, p=0.1, training=True,
                                       rng_key=k2, block_seq=8)
    out5 = jax.block_until_ready(out5)
    mask5 = np.asarray(out5) != 0.0
    np.testing.assert_allclose(np.asarray(out5)[mask5],
                               (np.asarray(ref3) / 0.9)[mask5],
                               rtol=1e-5, atol=1e-5)

    print("KERNEL_OK")
</pallas_src>

<mosaic_0001>
module attributes {stable_mosaic.version = 11 : i64} {
  func.func @kernel(%arg0: i32, %arg1: memref<16x64xf32, #tpu.memory_space<vmem>>, %arg2: memref<16x1x32xf32, #tpu.memory_space<vmem>>, %arg3: memref<16x64xf32, #tpu.memory_space<vmem>>) attributes {dimension_semantics = [#tpu.dimension_semantics<parallel>], iteration_bounds = array<i64: 4>, scalar_prefetch = 0 : i64, scratch_operands = 0 : i64, tpu.core_type = #tpu.core_type<tc>, window_params = [{transform_indices = @transform_0, window_bounds = array<i64: 16, 64>}, {transform_indices = @transform_1, window_bounds = array<i64: 16, 1, 32>}, {transform_indices = @transform_2, window_bounds = array<i64: 16, 64>}]} {
    %c0 = arith.constant 0 : index
    %c0_0 = arith.constant 0 : index
    %0 = vector.load %arg1[%c0, %c0_0] : memref<16x64xf32, #tpu.memory_space<vmem>>, vector<16x64xf32>
    %c0_1 = arith.constant 0 : index
    %c0_2 = arith.constant 0 : index
    %c0_3 = arith.constant 0 : index
    %1 = vector.load %arg2[%c0_1, %c0_2, %c0_3] : memref<16x1x32xf32, #tpu.memory_space<vmem>>, vector<16x1x32xf32>
    %2 = vector.shape_cast %1 : vector<16x1x32xf32> to vector<16x32xf32>
    %3 = tpu.concatenate %2, %2 in 1 : vector<16x32xf32>, vector<16x32xf32> -> vector<16x64xf32>
    %4 = arith.addf %0, %3 : vector<16x64xf32>
    %c0_4 = arith.constant 0 : index
    %c0_5 = arith.constant 0 : index
    %5 = vector.load %arg3[%c0_4, %c0_5] : memref<16x64xf32, #tpu.memory_space<vmem>>, vector<16x64xf32>
    tpu.vector_store %arg3[%c0_4, %c0_5], %4 {strides = array<i32>} : memref<16x64xf32, #tpu.memory_space<vmem>>, vector<16x64xf32>,
    return
  }
  func.func @transform_0(%arg0: i32) -> (i32, i32) {
    %c0_i32 = arith.constant 0 : i32
    %c0_i32_0 = arith.constant 0 : i32
    return %arg0, %c0_i32 : i32, i32
  }
  func.func @transform_1(%arg0: i32) -> (i32, i32, i32) {
    %c0_i32 = arith.constant 0 : i32
    %c0_i32_0 = arith.constant 0 : i32
    %c0_i32_1 = arith.constant 0 : i32
    return %arg0, %c0_i32, %c0_i32_0 : i32, i32, i32
  }
  func.func @transform_2(%arg0: i32) -> (i32, i32) {
    %c0_i32 = arith.constant 0 : i32
    %c0_i32_0 = arith.constant 0 : i32
    return %arg0, %c0_i32 : i32, i32
  }
}

</mosaic_0001>

<llo_original>
// kernel: tpu_custom_call.1
$region0: #{tpu_custom_call.1}
  #allocation0 [shape = 'u32[]', space=smem, size = 0x4, offset = 0x4, fixed_abs, tag = 'smem constant byte address 0x4 - core index']
  #allocation1 [shape = 'u32[144,128]{1,0:T(1,128)}', space=vmem, size = 0x12000, scoped, tag = 'internal scratch']
  %s0 = inlined_call_operand.vmem [shape: f32[64,64], index: 0, kind: input, shape index: {}]
  %s1 = inlined_call_operand.vmem [shape: f32[5000,1,32], index: 1, kind: input, shape index: {}]
  %s2 = inlined_call_operand.hbm [shape: f32[64,64], index: 2, kind: output, shape index: {}]
  %s3 = sld [smem:[#allocation0]]
  $region41: #{tpu_custom_call.1} parent=0
    _
  %s5 = ssub.s32 1, %s3
  %s6 = scalar_select 0, %s5, %s3
  $region1: #{tpu_custom_call.1} parent=0
    #allocation2 [shape = 'u8[16384]{0}', space=vmem, size = 0x4000, scoped, tag = 'output window, operand 0']
    #allocation3 [shape = 's32[2]{0}', space=sflag, size = 0x8, scoped, tag = 'scoped memory for tpu_custom_call.1']
    %7 = vsyncpa [#allocation3], 0
    %s8 = scalar_lea.sflag [#allocation3], 1
    %9 = vsyncpa %s8, 0
    loop: start=0, step=1, limit=6
    $region2: #{tpu_custom_call.1} parent=1 // loop_pre_header
      _
    $region3: #{tpu_custom_call.1} parent=1 // loop_header
      %s11 = sphi 0, %s15
      %p12 = scmp.ge.s32.totalorder %s11, 6
      %s21 = sphi 0, %s23
      %s24 = sphi 0, %s21
      %s25 = sphi 0, %s24
      %s41 = sphi 0, %s25
      %s47 = sphi 0, %s49
      %s50 = sphi 0, %s47
      %s51 = sphi 0, %s50
      %s67 = sphi 0, %s51
      %s73 = sphi 0, %s75
      %s76 = sphi 0, %s73
      %s77 = sphi 0, %s76
      %s93 = sphi 0, %s77
    $region4: #{tpu_custom_call.1} parent=1 // loop_header_branch
      %14 = sbr.rel (%p12) target = $region8
    $region5: #{tpu_custom_call.1} parent=1 // loop_body
      %s16 = ssub.s32 %s11, 1
      %s17 = ssub.s32 %s11, 2
      %s18 = sadd.s32 %s11, 1
      %s19 = ssub.s32 %s11, %s18
      %p20 = scmp.eq.s32.totalorder %s19, 0
      %s22 = sadd.s32 %s21, 1
      %s23 = scalar_select %p20, %s21, %s22
      %p26 = pneg %p20
      %p27 = scmp.eq.s32.totalorder %s11, 3
      %p28 = por %p26, %p27
      %p29 = scmp.ne.s32.totalorder %s21, %s24
      %p30 = scmp.eq.s32.totalorder %s11, 0
      %p31 = por %p29, %p30
      %p32 = scmp.ne.s32.totalorder %s21, %s24
      %p33 = scmp.eq.s32.totalorder %s16, 3
      %p34 = por %p32, %p33
      %p35 = scmp.ne.s32.totalorder %s24, %s25
      %p36 = scmp.eq.s32.totalorder %s16, 0
      %p37 = por %p35, %p36
      %p38 = scmp.ne.s32.totalorder %s24, %s25
      %p39 = scmp.eq.s32.totalorder %s17, 3
      %p40 = por %p38, %p39
      %p42 = scmp.ne.s32.totalorder %s25, %s41
      %p43 = scmp.eq.s32.totalorder %s17, 0
      %p44 = por %p42, %p43
      %s45 = ssub.s32 %s11, %s18
      %p46 = scmp.eq.s32.totalorder %s45, 0
      %s48 = sadd.s32 %s47, 1
      %s49 = scalar_select %p46, %s47, %s48
      %p52 = pneg %p46
      %p53 = scmp.eq.s32.totalorder %s11, 3
      %p54 = por %p52, %p53
      %p55 = scmp.ne.s32.totalorder %s47, %s50
      %p56 = scmp.eq.s32.totalorder %s11, 0
      %p57 = por %p55, %p56
      %p58 = scmp.ne.s32.totalorder %s47, %s50
      %p59 = scmp.eq.s32.totalorder %s16, 3
      %p60 = por %p58, %p59
      %p61 = scmp.ne.s32.totalorder %s50, %s51
      %p62 = scmp.eq.s32.totalorder %s16, 0
      %p63 = por %p61, %p62
      %p64 = scmp.ne.s32.totalorder %s50, %s51
      %p65 = scmp.eq.s32.totalorder %s17, 3
      %p66 = por %p64, %p65
      %p68 = scmp.ne.s32.totalorder %s51, %s67
      %p69 = scmp.eq.s32.totalorder %s17, 0
      %p70 = por %p68, %p69
      %s71 = ssub.s32 %s11, %s18
      %p72 = scmp.eq.s32.totalorder %s71, 0
      %s74 = sadd.s32 %s73, 1
      %s75 = scalar_select %p72, %s73, %s74
      %p78 = pneg %p72
      %p79 = scmp.eq.s32.totalorder %s11, 3
      %p80 = por %p78, %p79
      %p81 = scmp.ne.s32.totalorder %s73, %s76
      %p82 = scmp.eq.s32.totalorder %s11, 0
      %p83 = por %p81, %p82
      %p84 = scmp.ne.s32.totalorder %s73, %s76
      %p85 = scmp.eq.s32.totalorder %s16, 3
      %p86 = por %p84, %p85
      %p87 = scmp.ne.s32.totalorder %s76, %s77
      %p88 = scmp.eq.s32.totalorder %s16, 0
      %p89 = por %p87, %p88
      %p90 = scmp.ne.s32.totalorder %s76, %s77
      %p91 = scmp.eq.s32.totalorder %s17, 3
      %p92 = por %p90, %p91
      %p94 = scmp.ne.s32.totalorder %s77, %s93
      %p95 = scmp.eq.s32.totalorder %s17, 0
      %p96 = por %p94, %p95
      %p97 = scmp.le.s32.totalorder 1, %s11
      %p98 = scmp.lt.s32.totalorder %s11, 5
      %p99 = pnand %p97, %p98
      %p100 = pneg %p99
      // Predicated region
      $region9: #{tpu_custom_call.1} parent=5 // pred_check
        _
      $region10: #{tpu_custom_call.1} parent=5 // pred_check_branch
        %102 = sbr.rel (%p99) target = $region12
      $region11: #{tpu_custom_call.1} parent=5 // pred_region
        %s103 = ssub.s32 %s11, 1
      $region12: #{tpu_custom_call.1} parent=5 // pred_fallthru
        _
      %p104 = scmp.lt.s32.totalorder %s11, 4
      // Predicated region
      $region13: #{tpu_custom_call.1} parent=5 // pred_check
        %p105 = pneg %p104
      $region14: #{tpu_custom_call.1} parent=5 // pred_check_branch
        %107 = sbr.rel (%p105) target = $region16
      $region15: #{tpu_custom_call.1} parent=5 // pred_region
        // Predicated region
        $region17: #{tpu_custom_call.1} parent=15 // pred_check
          %p108 = pneg %p31
        $region18: #{tpu_custom_call.1} parent=15 // pred_check_branch
          %110 = sbr.rel (%p108) target = $region20
        $region19: #{tpu_custom_call.1} parent=15 // pred_region
          %s111 = smul.u32 2, %s11
          %p112 = scmp.lt.s32.totalorder %s111, 7
          %s113 = scalar_select %p112, %s111, 7
          %s114 = smul.addr %s113, 8
          %s115 = scalar_lea.vmem %s0, %s114
          %s116 = smul.u32 2, %s11
        $region20: #{tpu_custom_call.1} parent=15 // pred_fallthru
          _
        // Predicated region
        $region21: #{tpu_custom_call.1} parent=15 // pred_check
          %p117 = pneg %p57
        $region22: #{tpu_custom_call.1} parent=15 // pred_check_branch
          %119 = sbr.rel (%p117) target = $region24
        $region23: #{tpu_custom_call.1} parent=15 // pred_region
          %s120 = smul.u32 16, %s11
          %s121 = ssub.s32 5000, %s120
          %p122 = scmp.lt.s32.totalorder %s121, 16
          %s123 = scalar_select %p122, %s121, 16
          %s124 = smul.u32 16, %s123
          %p125 = scmp.lt.s32.totalorder %s120, 4999
          %s126 = scalar_select %p125, %s120, 4999
          %s127 = scalar_lea.vmem %s1, %s126
          %s128 = smul.u32 16, %s11
          %s129 = ssub.s32 5000, %s128
          %p130 = scmp.lt.s32.totalorder %s129, 16
          %s131 = scalar_select %p130, %s129, 16
          %s132 = smul.u32 16, %s131
        $region24: #{tpu_custom_call.1} parent=15 // pred_fallthru
          _
      $region16: #{tpu_custom_call.1} parent=5 // pred_fallthru
        _
      %p133 = scmp.le.s32.totalorder 1, %s11
      %p134 = scmp.lt.s32.totalorder %s11, 5
      %p135 = pnand %p133, %p134
      %p136 = pneg %p135
      // Predicated region
      $region25: #{tpu_custom_call.1} parent=5 // pred_check
        _
      $region26: #{tpu_custom_call.1} parent=5 // pred_check_branch
        %138 = sbr.rel (%p135) target = $region28
      $region27: #{tpu_custom_call.1} parent=5 // pred_region
        %s139 = ssub.s32 %s11, 1
        %s140 = smul.u32 2, %s16
        %p141 = scmp.lt.s32.totalorder %s140, 7
        %s142 = scalar_select %p141, %s140, 7
        %s143 = smul.addr %s142, 8
        %s144 = scalar_lea.vmem %s0, %s143
        %p145 = pneg %p37
        %p146 = pneg %p34
        %s147 = smul.u32 16, %s16
        %s148 = ssub.s32 5000, %s147
        %p149 = scmp.lt.s32.totalorder %s148, 16
        %s150 = scalar_select %p149, %s148, 16
        %s151 = smul.u32 16, %s150
        %p152 = scmp.lt.s32.totalorder %s147, 4999
        %s153 = scalar_select %p152, %s147, 4999
        %s154 = scalar_lea.vmem %s1, %s153
        %p155 = pneg %p63
        %p156 = pneg %p60
        %p157 = pneg %p89
        %p158 = pneg %p86
        %s159 = sand.u32 %s76, 1
        %s160 = scalar_lea.sflag [#allocation3], %s159
        %s161 = sand.u32 %s76, 1
        %s162 = smul.addr %s161, 16
        %s163 = scalar_lea.vmem [#allocation2], %s162
        %s164 = smul.u32 2, %s16
        %p165 = scmp.lt.s32.totalorder %s164, 7
        %s166 = scalar_select %p165, %s164, 7
        %s167 = smul.addr %s166, 8
        %s168 = scalar_lea.vmem %s0, %s167
        %s169 = smul.u32 2, %s16
        %s170 = smul.u32 16, %s16
        %s171 = ssub.s32 5000, %s170
        %p172 = scmp.lt.s32.totalorder %s171, 16
        %s173 = scalar_select %p172, %s171, 16
        %s174 = smul.u32 16, %s173
        %p175 = scmp.lt.s32.totalorder %s170, 4999
        %s176 = scalar_select %p175, %s170, 4999
        %s177 = scalar_lea.vmem %s1, %s176
        %s178 = smul.u32 16, %s16
        %s179 = ssub.s32 5000, %s178
        %p180 = scmp.lt.s32.totalorder %s179, 16
        %s181 = scalar_select %p180, %s179, 16
        %s182 = smul.u32 16, %s181
        %s183 = smul.u32 2, %s16
        %v184 = vld [vmem:[%s168] sm:$0xff]
        %v185 = vld [vmem:[%s168 + $0x8] sm:$0xff]
        %v186 = vld [vmem:[%s177] sm:$0x1]
        %v187 = vld [vmem:[%s177 + $0x1] sm:$0x1]
        %v188 = vld [vmem:[%s177 + $0x2] sm:$0x1]
        %v189 = vld [vmem:[%s177 + $0x3] sm:$0x1]
        %v190 = vld [vmem:[%s177 + $0x4] sm:$0x1]
        %v191 = vld [vmem:[%s177 + $0x5] sm:$0x1]
        %v192 = vld [vmem:[%s177 + $0x6] sm:$0x1]
        %v193 = vld [vmem:[%s177 + $0x7] sm:$0x1]
        %v194 = vld [vmem:[%s177 + $0x8] sm:$0x1]
        %v195 = vld [vmem:[%s177 + $0x9] sm:$0x1]
        %v196 = vld [vmem:[%s177 + $0xa] sm:$0x1]
        %v197 = vld [vmem:[%s177 + $0xb] sm:$0x1]
        %v198 = vld [vmem:[%s177 + $0xc] sm:$0x1]
        %v199 = vld [vmem:[%s177 + $0xd] sm:$0x1]
        %v200 = vld [vmem:[%s177 + $0xe] sm:$0x1]
        %v201 = vld [vmem:[%s177 + $0xf] sm:$0x1]
        %v218 = vcombine.low %v186, %v187
        %v219 = vcombine.low %v188, %v189
        %v220 = vcombine.low %v190, %v191
        %v221 = vcombine.low %v192, %v193
        %v223 = vunpack.c.l.s4 1966171168
        %v224 = vunpack.c.0.s8 %v223
        %v225 = vlaneseq
        %v226 = vshrl.u32 %v225, 7
        %v227 = vsub.s32 %v224, %v226
        %v228 = vrot.slane %v218, %v227
        %v230 = vunpack.c.l.s4 1966171168
        %v231 = vunpack.c.0.s8 %v230
        %v232 = vlaneseq
        %v233 = vshrl.u32 %v232, 7
        %v234 = vsub.s32 %v231, %v233
        %v235 = vrot.slane %v219, %v234
        %v237 = vunpack.c.l.s4 1966171168
        %v238 = vunpack.c.0.s8 %v237
        %v239 = vlaneseq
        %v240 = vshrl.u32 %v239, 7
        %v241 = vsub.s32 %v238, %v240
        %v242 = vrot.slane %v220, %v241
        %v244 = vunpack.c.l.s4 1966171168
        %v245 = vunpack.c.0.s8 %v244
        %v246 = vlaneseq
        %v247 = vshrl.u32 %v246, 7
        %v248 = vsub.s32 %v245, %v247
        %v249 = vrot.slane %v221, %v248
        %v250 = vcombine.low %v228, %v235
        %v251 = vcombine.low %v242, %v249
        %v253 = vunpack.c.l.s4 1966171168
        %v254 = vunpack.c.0.s8 %v253
        %v255 = vlaneseq
        %v256 = vshrl.u32 %v255, 7
        %v257 = vsub.s32 %v254, %v256
        %v258 = vrot.slane %v250, %v257
        %v260 = vunpack.c.l.s4 1966171168
        %v261 = vunpack.c.0.s8 %v260
        %v262 = vlaneseq
        %v263 = vshrl.u32 %v262, 7
        %v264 = vsub.s32 %v261, %v263
        %v265 = vrot.slane %v251, %v264
        %v266 = vcombine.low %v258, %v265
        %v267 = vcombine.low %v194, %v195
        %v268 = vcombine.low %v196, %v197
        %v269 = vcombine.low %v198, %v199
        %v270 = vcombine.low %v200, %v201
        %v272 = vunpack.c.l.s4 1966171168
        %v273 = vunpack.c.0.s8 %v272
        %v274 = vlaneseq
        %v275 = vshrl.u32 %v274, 7
        %v276 = vsub.s32 %v273, %v275
        %v277 = vrot.slane %v267, %v276
        %v279 = vunpack.c.l.s4 1966171168
        %v280 = vunpack.c.0.s8 %v279
        %v281 = vlaneseq
        %v282 = vshrl.u32 %v281, 7
        %v283 = vsub.s32 %v280, %v282
        %v284 = vrot.slane %v268, %v283
        %v286 = vunpack.c.l.s4 1966171168
        %v287 = vunpack.c.0.s8 %v286
        %v288 = vlaneseq
        %v289 = vshrl.u32 %v288, 7
        %v290 = vsub.s32 %v287, %v289
        %v291 = vrot.slane %v269, %v290
        %v293 = vunpack.c.l.s4 1966171168
        %v294 = vunpack.c.0.s8 %v293
        %v295 = vlaneseq
        %v296 = vshrl.u32 %v295, 7
        %v297 = vsub.s32 %v294, %v296
        %v298 = vrot.slane %v270, %v297
        %v299 = vcombine.low %v277, %v284
        %v300 = vcombine.low %v291, %v298
        %v302 = vunpack.c.l.s4 1966171168
        %v303 = vunpack.c.0.s8 %v302
        %v304 = vlaneseq
        %v305 = vshrl.u32 %v304, 7
        %v306 = vsub.s32 %v303, %v305
        %v307 = vrot.slane %v299, %v306
        %v309 = vunpack.c.l.s4 1966171168
        %v310 = vunpack.c.0.s8 %v309
        %v311 = vlaneseq
        %v312 = vshrl.u32 %v311, 7
        %v313 = vsub.s32 %v310, %v312
        %v314 = vrot.slane %v300, %v313
        %v315 = vcombine.low %v307, %v314
        %318 = vrot.lane.b32.xlu0 %v266, 32
        %v319 = vpop.permute.xlu0 %318
        %320 = vrot.lane.b32.xlu0 %v315, 32
        %v321 = vpop.permute.xlu0 %320
        %vm324 = vcmask 261120
        %v325 = vsel %vm324, %v266, %v319
        %v326 = vsel %vm324, %v315, %v321
        %v327 = vadd.f32 %v184, %v325
        %v328 = vadd.f32 %v185, %v326
        %vm329 = vcmask 523264
        %330 = vst.msk [vmem:[%s163] sm:$0xff] %vm329, %v327
        %331 = vst.msk [vmem:[%s163 + $0x8] sm:$0xff] %vm329, %v328
        %s332 = sand.u32 %s76, 1
        %s333 = scalar_lea.sflag [#allocation3], %s332
        %s334 = sand.u32 %s76, 1
        %s335 = smul.addr %s334, 16
        %s336 = scalar_lea.vmem [#allocation2], %s335
        // Predicated region
        $region29: #{tpu_custom_call.1} parent=27 // pred_check
          %p337 = pneg %p86
        $region30: #{tpu_custom_call.1} parent=27 // pred_check_branch
          %339 = sbr.rel (%p337) target = $region32
        $region31: #{tpu_custom_call.1} parent=27 // pred_region
          %s340 = smul.u32 2, %s16
          %s342 = ssub.s32 256, 256
          %343 = vsyncadd %s333, %s342
          %s344 = smul.addr %s340, 128
          %s345 = scalar_lea.hbm %s2, %s344
          %s346 = sshll.u32 %s336, 4
          %s347 = int_to_ptr.vmem [resolvable:$true] %s346
          %352 = dma.vmem_to_hbm [thread:$0]  %s347, 256, %s345, %s333, 128, 128, 8
        $region32: #{tpu_custom_call.1} parent=27 // pred_fallthru
          _
      $region28: #{tpu_custom_call.1} parent=5 // pred_fallthru
        _
      %p353 = scmp.le.s32.totalorder 2, %s11
      // Predicated region
      $region33: #{tpu_custom_call.1} parent=5 // pred_check
        %p354 = pneg %p353
      $region34: #{tpu_custom_call.1} parent=5 // pred_check_branch
        %356 = sbr.rel (%p354) target = $region36
      $region35: #{tpu_custom_call.1} parent=5 // pred_region
        %s357 = ssub.s32 %s11, 2
        // Predicated region
        $region37: #{tpu_custom_call.1} parent=35 // pred_check
          %p358 = pneg %p92
        $region38: #{tpu_custom_call.1} parent=35 // pred_check_branch
          %360 = sbr.rel (%p358) target = $region40
        $region39: #{tpu_custom_call.1} parent=35 // pred_region
          %s361 = sand.u32 %s77, 1
          %s362 = scalar_lea.sflag [#allocation3], %s361
          %s363 = sand.u32 %s77, 1
          %s364 = smul.addr %s363, 16
          %s365 = scalar_lea.vmem [#allocation2], %s364
          %366 = dma.done %s362, 256
        $region40: #{tpu_custom_call.1} parent=35 // pred_fallthru
          _
      $region36: #{tpu_custom_call.1} parent=5 // pred_fallthru
        _
    $region6: #{tpu_custom_call.1} parent=1 // loop_footer
      %s15 = sadd.s32 1, %s11
    $region7: #{tpu_custom_call.1} parent=1 // loop_footer_branch
      %10 = sbr.rel target = $region3
    $region8: #{tpu_custom_call.1} parent=1 // loop_exit
      _
    %367 = vsyncpa [#allocation3], 1
    %s368 = scalar_lea.sflag [#allocation3], 1
    %369 = vsyncpa %s368, 1

</llo_original>
